<compile_context>
chip_gen: v5e
topology: v5e:2x2
jax: 0.10.0
libtpu: 0.0.40
codegen_flags: <defaults>
</compile_context>

<pallas_src>
import jax
import jax.numpy as jnp
from jax import lax
from jax.experimental import pallas as pl
from jax.experimental.pallas import tpu as pltpu


def _recompose_kernel(targets_ref, w_ref, out_ref):
    # targets_ref: (TM, K)   w_ref: (1, K)   out_ref: (1, TM)
    # out[0, m] = sum_k w[0, k] * targets[m, k]
    # Both operands contracted on axis 1 (lane axis): the big (TM, K) tile stays
    # untransposed (flash-attention QK^T pattern), result is lane-dense (1, TM).
    out_ref[...] = lax.dot_general(
        w_ref[...],
        targets_ref[...],
        dimension_numbers=(((1,), (1,)), ((), ())),
        preferred_element_type=jnp.float32,
    ).astype(out_ref.dtype)


def _vmem_capacity_bytes():
    # Generation-aware VMEM size (v5e/v6e: 128 MiB, v7x: 64 MiB).  Fall back to
    # the smallest (v7x-safe) value if the query is unavailable.
    try:
        return int(pltpu.get_tpu_info().vmem_capacity_bytes)
    except Exception:
        return 64 * 1024 * 1024


def recompose(targets, temporal_bases, scaling_factors, batch_indices, *,
              target_block_bytes=4 * 1024 * 1024,
              small_bytes=2 * 1024 * 1024):
    """Pallas implementation of Recompose.forward for a given phase.

    targets:          (M, K) float32
    temporal_bases:   (T, K) float32
    scaling_factors:  (K,)   float32
    batch_indices:    (B,)   int32, B >= 2 (column 1 of recomped is selected)
    returns:          (M, 1) == (targets @ diag(scale) @ sel.T)[:, 1].reshape(-1, 1)
    """
    M, K = targets.shape
    if batch_indices.shape[0] < 2:
        raise ValueError("batch_indices must have length >= 2 (column 1 is selected)")

    # O(K) plain-JAX glue: only the row indexed by batch_indices[1] is ever used,
    # and diag(scale) @ row.T == (scale * row).  Folding the scale here removes
    # one resident VMEM buffer and one per-step VPU multiply from the kernel.
    w = (jnp.take(temporal_bases, batch_indices[1], axis=0)
         * scaling_factors).reshape(1, K).astype(targets.dtype)

    bytes_per_row = K * targets.dtype.itemsize
    vmem_cap = _vmem_capacity_bytes()

    if M * bytes_per_row <= small_bytes:
        # Small-problem fast path: one full-array block (always a legal block
        # shape), no multi-step pipeline overhead.
        tm = M
    else:
        # Large M: stream ~target_block_bytes of targets per grid step, capped so
        # the double-buffered targets stream uses at most ~half of VMEM.
        # TODO(synk): for very large K (tile > VMEM even at tm=128), add a K grid
        # axis with a VMEM f32 accumulator instead of a full-K block.
        tm = min(target_block_bytes, vmem_cap // 4) // bytes_per_row
        # Keep >= 2 grid steps so ("parallel",) spreads tiles over both v7x TCs.
        half_m = -(-((M + 1) // 2) // 128) * 128
        tm = min(tm, half_m)
        tm = max(128, (tm // 128) * 128)

    grid_m = pl.cdiv(M, tm)  # ragged tail handled by partial edge blocks (no jnp.pad)

    out = pl.pallas_call(
        _recompose_kernel,
        out_shape=jax.ShapeDtypeStruct((1, M), targets.dtype),
        grid=(grid_m,),
        in_specs=[
            pl.BlockSpec((tm, K), lambda i: (i, 0)),   # targets: streamed M-tiles
            pl.BlockSpec((1, K), lambda i: (0, 0)),    # pre-scaled basis row (resident)
        ],
        out_specs=pl.BlockSpec((1, tm), lambda i: (0, i)),  # lane-dense (1, TM)
        compiler_params=pltpu.CompilerParams(
            dimension_semantics=("parallel",),               # M-tiles independent
            vmem_limit_bytes=int(vmem_cap * 3 // 4),          # headroom on every gen
        ),
    )(targets, w)

    # (1, M) -> (M, 1): pure reshape of M*4 bytes, negligible vs the M*K stream.
    return out.reshape(-1, 1)


if __name__ == "__main__":
    key = jax.random.PRNGKey(0)
    k_t1, k_t2, k_tb, k_sf = jax.random.split(key, 4)

    def reference(targets, temporal_bases, scaling_factors, batch_indices):
        sel = temporal_bases[batch_indices, :]
        return (targets @ (jnp.diag(scaling_factors) @ sel.T))[:, 1].reshape(-1, 1)

    K, T, B = 128, 16, 8
    temporal_bases = jax.random.normal(k_tb, (T, K), dtype=jnp.float32)
    scaling_factors = jax.random.uniform(k_sf, (K,), dtype=jnp.float32) + 0.5
    batch_indices = jnp.array([3, 1, 4, 0, 2, 5, 7, 6], dtype=jnp.int32)

    # Case 1: small-problem single-block fast path.
    M1 = 1024
    targets1 = jax.random.normal(k_t1, (M1, K), dtype=jnp.float32)
    out1 = jax.block_until_ready(
        recompose(targets1, temporal_bases, scaling_factors, batch_indices))
    ref1 = reference(targets1, temporal_bases, scaling_factors, batch_indices)
    assert out1.shape == (M1, 1)
    assert jnp.allclose(out1, ref1, atol=1e-4, rtol=1e-4)

    # Case 2: tiled path with a ragged (non-multiple-of-block) M and >= 2 grid
    # steps; small overrides keep the demo tiny while exercising the large-M
    # code path (partial edge block, multi-step parallel grid).
    M2 = 1000
    targets2 = jax.random.normal(k_t2, (M2, K), dtype=jnp.float32)
    out2 = jax.block_until_ready(
        recompose(targets2, temporal_bases, scaling_factors, batch_indices,
                  target_block_bytes=256 * 1024, small_bytes=128 * 1024))
    ref2 = reference(targets2, temporal_bases, scaling_factors, batch_indices)
    assert out2.shape == (M2, 1)
    assert jnp.allclose(out2, ref2, atol=1e-4, rtol=1e-4)

    print("KERNEL_OK")
</pallas_src>

<mosaic_0001>
module attributes {stable_mosaic.version = 11 : i64} {
  func.func @_recompose_kernel(%arg0: i32, %arg1: memref<1024x128xf32, #tpu.memory_space<vmem>>, %arg2: memref<1x128xf32, #tpu.memory_space<vmem>>, %arg3: memref<1x1024xf32, #tpu.memory_space<vmem>>) attributes {dimension_semantics = [#tpu.dimension_semantics<parallel>], iteration_bounds = array<i64: 1>, scalar_prefetch = 0 : i64, scratch_operands = 0 : i64, tpu.core_type = #tpu.core_type<tc>, window_params = [{transform_indices = @transform_0, window_bounds = array<i64: 1024, 128>}, {pipeline_mode = #tpu.pipeline_mode<synchronous>, transform_indices = @transform_1, window_bounds = array<i64: 1, 128>}, {transform_indices = @transform_2, window_bounds = array<i64: 1, 1024>}]} {
    %c0 = arith.constant 0 : index
    %c0_0 = arith.constant 0 : index
    %0 = vector.load %arg2[%c0, %c0_0] : memref<1x128xf32, #tpu.memory_space<vmem>>, vector<1x128xf32>
    %c0_1 = arith.constant 0 : index
    %c0_2 = arith.constant 0 : index
    %1 = vector.load %arg1[%c0_1, %c0_2] : memref<1024x128xf32, #tpu.memory_space<vmem>>, vector<1024x128xf32>
    %cst = arith.constant dense<0.000000e+00> : vector<1x1024xf32>
    %2 = tpu.matmul %0, %1, %cst {dimension_numbers = #tpu.dot_dimension_numbers<[1], [1], [0], [0], [0, 0, 1, 0], [], []>} : vector<1x128xf32>, vector<1024x128xf32>, vector<1x1024xf32> -> vector<1x1024xf32>
    %c0_3 = arith.constant 0 : index
    %c0_4 = arith.constant 0 : index
    %3 = vector.load %arg3[%c0_3, %c0_4] : memref<1x1024xf32, #tpu.memory_space<vmem>>, vector<1x1024xf32>
    tpu.vector_store %arg3[%c0_3, %c0_4], %2 {strides = array<i32>} : memref<1x1024xf32, #tpu.memory_space<vmem>>, vector<1x1024xf32>,
    return
  }
  func.func @transform_0(%arg0: i32) -> (i32, i32) {
    %c0_i32 = arith.constant 0 : i32
    %c0_i32_0 = arith.constant 0 : i32
    return %arg0, %c0_i32 : i32, i32
  }
  func.func @transform_1(%arg0: i32) -> (i32, i32) {
    %c0_i32 = arith.constant 0 : i32
    %c0_i32_0 = arith.constant 0 : i32
    %c0_i32_1 = arith.constant 0 : i32
    return %c0_i32, %c0_i32_0 : i32, i32
  }
  func.func @transform_2(%arg0: i32) -> (i32, i32) {
    %c0_i32 = arith.constant 0 : i32
    %c0_i32_0 = arith.constant 0 : i32
    return %c0_i32, %arg0 : i32, i32
  }
}

</mosaic_0001>

<llo_original>
// kernel: tpu_custom_call.1
$region0: #{tpu_custom_call.1}
  #allocation0 [shape = 'u32[]', space=smem, size = 0x4, offset = 0x4, fixed_abs, tag = 'smem constant byte address 0x4 - core index']
  #allocation1 [shape = 'u32[72,128]{1,0:T(1,128)}', space=vmem, size = 0x9000, scoped, tag = 'internal scratch']
  %s0 = inlined_call_operand.hbm [shape: f32[1024,128], index: 0, kind: input, shape index: {}]
  %s1 = inlined_call_operand.hbm [shape: f32[1,128], index: 1, kind: input, shape index: {}]
  %s2 = inlined_call_operand.hbm [shape: f32[1,1024], index: 2, kind: output, shape index: {}]
  %s3 = sld [smem:[#allocation0]]
  $region26: #{tpu_custom_call.1} parent=0
    _
  %s5 = ssub.s32 1, %s3
  %s6 = scalar_select 0, %s5, %s3
  $region1: #{tpu_custom_call.1} parent=0
    #allocation2 [shape = 'u8[524288]{0}', space=vmem, size = 0x80000, scoped, tag = 'input window, operand 0, single buffered']
    #allocation3 [shape = 's32[1]{0}', space=sflag, size = 0x4, scoped, tag = 'scoped memory for tpu_custom_call.1']
    #allocation4 [shape = 's32[1]{0}', space=sflag, size = 0x4, scoped, tag = 'scoped memory for tpu_custom_call.1']
    #allocation5 [shape = 'u8[512]{0}', space=vmem, size = 0x400, scoped, tag = 'input window, operand 1, single buffered']
    #allocation6 [shape = 's32[1]{0}', space=sflag, size = 0x4, scoped, tag = 'scoped memory for tpu_custom_call.1']
    #allocation7 [shape = 'u8[4096]{0}', space=vmem, size = 0x1000, scoped, tag = 'output window, operand 0, single buffered']
    %7 = vsyncpa [#allocation3], 0
    %8 = vsyncpa [#allocation6], 0
    %9 = vsyncpa [#allocation4], 0
    // Predicated region
    $region2: #{tpu_custom_call.1} parent=1 // pred_check
      _
    $region3: #{tpu_custom_call.1} parent=1 // pred_check_branch
      %11 = sbr.rel (0) target = $region5
    $region4: #{tpu_custom_call.1} parent=1 // pred_region
      %13 = vsyncadd [#allocation3], 0
      %s14 = sshll.u32 %s0, 4
      %s15 = int_to_ptr.hbm [resolvable:$true] %s14
      %s16 = sshll.u32 [#allocation2], 4
      %s17 = int_to_ptr.vmem [resolvable:$true] %s16
      %22 = dma.hbm_to_vmem [thread:$0]  %s15, 16384, %s17, [#allocation3], 128, 128, 8
    $region5: #{tpu_custom_call.1} parent=1 // pred_fallthru
      _
    // Predicated region
    $region6: #{tpu_custom_call.1} parent=1 // pred_check
      _
    $region7: #{tpu_custom_call.1} parent=1 // pred_check_branch
      %24 = sbr.rel (0) target = $region9
    $region8: #{tpu_custom_call.1} parent=1 // pred_region
      %26 = vsyncadd [#allocation6], 0
      %s28 = sshll.u32 %s1, 4
      %s29 = int_to_ptr.hbm [resolvable:$true] %s28
      %s30 = sshll.u32 [#allocation5], 4
      %s31 = int_to_ptr.vmem [resolvable:$true] %s30
      %33 = dma.hbm_to_vmem [thread:$0]  %s29, 16, %s31, [#allocation6]
    $region9: #{tpu_custom_call.1} parent=1 // pred_fallthru
      _
    // Predicated region
    $region10: #{tpu_custom_call.1} parent=1 // pred_check
      _
    $region11: #{tpu_custom_call.1} parent=1 // pred_check_branch
      %35 = sbr.rel (0) target = $region13
    $region12: #{tpu_custom_call.1} parent=1 // pred_region
      %37 = dma.done [#allocation3], 16384
    $region13: #{tpu_custom_call.1} parent=1 // pred_fallthru
      _
    // Predicated region
    $region14: #{tpu_custom_call.1} parent=1 // pred_check
      _
    $region15: #{tpu_custom_call.1} parent=1 // pred_check_branch
      %39 = sbr.rel (0) target = $region17
    $region16: #{tpu_custom_call.1} parent=1 // pred_region
      %41 = dma.done [#allocation6], 16
    $region17: #{tpu_custom_call.1} parent=1 // pred_fallthru
      _
    %v42 = vld [vmem:[#allocation5] sm:$0x1]
    %v43 = vld [vmem:[#allocation2] sm:$0xff]
    %v44 = vld [vmem:[#allocation2 + $0x8] sm:$0xff]
    %v45 = vld [vmem:[#allocation2 + $0x10] sm:$0xff]
    %v46 = vld [vmem:[#allocation2 + $0x18] sm:$0xff]
    %v47 = vld [vmem:[#allocation2 + $0x20] sm:$0xff]
    %v48 = vld [vmem:[#allocation2 + $0x28] sm:$0xff]
    %v49 = vld [vmem:[#allocation2 + $0x30] sm:$0xff]
    %v50 = vld [vmem:[#allocation2 + $0x38] sm:$0xff]
    %v51 = vld [vmem:[#allocation2 + $0x40] sm:$0xff]
    %v52 = vld [vmem:[#allocation2 + $0x48] sm:$0xff]
    %v53 = vld [vmem:[#allocation2 + $0x50] sm:$0xff]
    %v54 = vld [vmem:[#allocation2 + $0x58] sm:$0xff]
    %v55 = vld [vmem:[#allocation2 + $0x60] sm:$0xff]
    %v56 = vld [vmem:[#allocation2 + $0x68] sm:$0xff]
    %v57 = vld [vmem:[#allocation2 + $0x70] sm:$0xff]
    %v58 = vld [vmem:[#allocation2 + $0x78] sm:$0xff]
    %v59 = vld [vmem:[#allocation2 + $0x80] sm:$0xff]
    %v60 = vld [vmem:[#allocation2 + $0x88] sm:$0xff]
    %v61 = vld [vmem:[#allocation2 + $0x90] sm:$0xff]
    %v62 = vld [vmem:[#allocation2 + $0x98] sm:$0xff]
    %v63 = vld [vmem:[#allocation2 + $0xa0] sm:$0xff]
    %v64 = vld [vmem:[#allocation2 + $0xa8] sm:$0xff]
    %v65 = vld [vmem:[#allocation2 + $0xb0] sm:$0xff]
    %v66 = vld [vmem:[#allocation2 + $0xb8] sm:$0xff]
    %v67 = vld [vmem:[#allocation2 + $0xc0] sm:$0xff]
    %v68 = vld [vmem:[#allocation2 + $0xc8] sm:$0xff]
    %v69 = vld [vmem:[#allocation2 + $0xd0] sm:$0xff]
    %v70 = vld [vmem:[#allocation2 + $0xd8] sm:$0xff]
    %v71 = vld [vmem:[#allocation2 + $0xe0] sm:$0xff]
    %v72 = vld [vmem:[#allocation2 + $0xe8] sm:$0xff]
    %v73 = vld [vmem:[#allocation2 + $0xf0] sm:$0xff]
    %v74 = vld [vmem:[#allocation2 + $0xf8] sm:$0xff]
    %v75 = vld [vmem:[#allocation2 + $0x100] sm:$0xff]
    %v76 = vld [vmem:[#allocation2 + $0x108] sm:$0xff]
    %v77 = vld [vmem:[#allocation2 + $0x110] sm:$0xff]
    %v78 = vld [vmem:[#allocation2 + $0x118] sm:$0xff]
    %v79 = vld [vmem:[#allocation2 + $0x120] sm:$0xff]
    %v80 = vld [vmem:[#allocation2 + $0x128] sm:$0xff]
    %v81 = vld [vmem:[#allocation2 + $0x130] sm:$0xff]
    %v82 = vld [vmem:[#allocation2 + $0x138] sm:$0xff]
    %v83 = vld [vmem:[#allocation2 + $0x140] sm:$0xff]
    %v84 = vld [vmem:[#allocation2 + $0x148] sm:$0xff]
    %v85 = vld [vmem:[#allocation2 + $0x150] sm:$0xff]
    %v86 = vld [vmem:[#allocation2 + $0x158] sm:$0xff]
    %v87 = vld [vmem:[#allocation2 + $0x160] sm:$0xff]
    %v88 = vld [vmem:[#allocation2 + $0x168] sm:$0xff]
    %v89 = vld [vmem:[#allocation2 + $0x170] sm:$0xff]
    %v90 = vld [vmem:[#allocation2 + $0x178] sm:$0xff]
    %v91 = vld [vmem:[#allocation2 + $0x180] sm:$0xff]
    %v92 = vld [vmem:[#allocation2 + $0x188] sm:$0xff]
    %v93 = vld [vmem:[#allocation2 + $0x190] sm:$0xff]
    %v94 = vld [vmem:[#allocation2 + $0x198] sm:$0xff]
    %v95 = vld [vmem:[#allocation2 + $0x1a0] sm:$0xff]
    %v96 = vld [vmem:[#allocation2 + $0x1a8] sm:$0xff]
    %v97 = vld [vmem:[#allocation2 + $0x1b0] sm:$0xff]
    %v98 = vld [vmem:[#allocation2 + $0x1b8] sm:$0xff]
    %v99 = vld [vmem:[#allocation2 + $0x1c0] sm:$0xff]
    %v100 = vld [vmem:[#allocation2 + $0x1c8] sm:$0xff]
    %v101 = vld [vmem:[#allocation2 + $0x1d0] sm:$0xff]
    %v102 = vld [vmem:[#allocation2 + $0x1d8] sm:$0xff]
    %v103 = vld [vmem:[#allocation2 + $0x1e0] sm:$0xff]
    %v104 = vld [vmem:[#allocation2 + $0x1e8] sm:$0xff]
    %v105 = vld [vmem:[#allocation2 + $0x1f0] sm:$0xff]
    %v106 = vld [vmem:[#allocation2 + $0x1f8] sm:$0xff]
    %v107 = vld [vmem:[#allocation2 + $0x200] sm:$0xff]
    %v108 = vld [vmem:[#allocation2 + $0x208] sm:$0xff]
    %v109 = vld [vmem:[#allocation2 + $0x210] sm:$0xff]
    %v110 = vld [vmem:[#allocation2 + $0x218] sm:$0xff]
    %v111 = vld [vmem:[#allocation2 + $0x220] sm:$0xff]
    %v112 = vld [vmem:[#allocation2 + $0x228] sm:$0xff]
    %v113 = vld [vmem:[#allocation2 + $0x230] sm:$0xff]
    %v114 = vld [vmem:[#allocation2 + $0x238] sm:$0xff]
    %v115 = vld [vmem:[#allocation2 + $0x240] sm:$0xff]
    %v116 = vld [vmem:[#allocation2 + $0x248] sm:$0xff]
    %v117 = vld [vmem:[#allocation2 + $0x250] sm:$0xff]
    %v118 = vld [vmem:[#allocation2 + $0x258] sm:$0xff]
    %v119 = vld [vmem:[#allocation2 + $0x260] sm:$0xff]
    %v120 = vld [vmem:[#allocation2 + $0x268] sm:$0xff]
    %v121 = vld [vmem:[#allocation2 + $0x270] sm:$0xff]
    %v122 = vld [vmem:[#allocation2 + $0x278] sm:$0xff]
    %v123 = vld [vmem:[#allocation2 + $0x280] sm:$0xff]
    %v124 = vld [vmem:[#allocation2 + $0x288] sm:$0xff]
    %v125 = vld [vmem:[#allocation2 + $0x290] sm:$0xff]
    %v126 = vld [vmem:[#allocation2 + $0x298] sm:$0xff]
    %v127 = vld [vmem:[#allocation2 + $0x2a0] sm:$0xff]
    %v128 = vld [vmem:[#allocation2 + $0x2a8] sm:$0xff]
    %v129 = vld [vmem:[#allocation2 + $0x2b0] sm:$0xff]
    %v130 = vld [vmem:[#allocation2 + $0x2b8] sm:$0xff]
    %v131 = vld [vmem:[#allocation2 + $0x2c0] sm:$0xff]
    %v132 = vld [vmem:[#allocation2 + $0x2c8] sm:$0xff]
    %v133 = vld [vmem:[#allocation2 + $0x2d0] sm:$0xff]
    %v134 = vld [vmem:[#allocation2 + $0x2d8] sm:$0xff]
    %v135 = vld [vmem:[#allocation2 + $0x2e0] sm:$0xff]
    %v136 = vld [vmem:[#allocation2 + $0x2e8] sm:$0xff]
    %v137 = vld [vmem:[#allocation2 + $0x2f0] sm:$0xff]
    %v138 = vld [vmem:[#allocation2 + $0x2f8] sm:$0xff]
    %v139 = vld [vmem:[#allocation2 + $0x300] sm:$0xff]
    %v140 = vld [vmem:[#allocation2 + $0x308] sm:$0xff]
    %v141 = vld [vmem:[#allocation2 + $0x310] sm:$0xff]
    %v142 = vld [vmem:[#allocation2 + $0x318] sm:$0xff]
    %v143 = vld [vmem:[#allocation2 + $0x320] sm:$0xff]
    %v144 = vld [vmem:[#allocation2 + $0x328] sm:$0xff]
    %v145 = vld [vmem:[#allocation2 + $0x330] sm:$0xff]
    %v146 = vld [vmem:[#allocation2 + $0x338] sm:$0xff]
    %v147 = vld [vmem:[#allocation2 + $0x340] sm:$0xff]
    %v148 = vld [vmem:[#allocation2 + $0x348] sm:$0xff]
    %v149 = vld [vmem:[#allocation2 + $0x350] sm:$0xff]
    %v150 = vld [vmem:[#allocation2 + $0x358] sm:$0xff]
    %v151 = vld [vmem:[#allocation2 + $0x360] sm:$0xff]
    %v152 = vld [vmem:[#allocation2 + $0x368] sm:$0xff]
    %v153 = vld [vmem:[#allocation2 + $0x370] sm:$0xff]
    %v154 = vld [vmem:[#allocation2 + $0x378] sm:$0xff]
    %v155 = vld [vmem:[#allocation2 + $0x380] sm:$0xff]
    %v156 = vld [vmem:[#allocation2 + $0x388] sm:$0xff]
    %v157 = vld [vmem:[#allocation2 + $0x390] sm:$0xff]
    %v158 = vld [vmem:[#allocation2 + $0x398] sm:$0xff]
    %v159 = vld [vmem:[#allocation2 + $0x3a0] sm:$0xff]
    %v160 = vld [vmem:[#allocation2 + $0x3a8] sm:$0xff]
    %v161 = vld [vmem:[#allocation2 + $0x3b0] sm:$0xff]
    %v162 = vld [vmem:[#allocation2 + $0x3b8] sm:$0xff]
    %v163 = vld [vmem:[#allocation2 + $0x3c0] sm:$0xff]
    %v164 = vld [vmem:[#allocation2 + $0x3c8] sm:$0xff]
    %v165 = vld [vmem:[#allocation2 + $0x3d0] sm:$0xff]
    %v166 = vld [vmem:[#allocation2 + $0x3d8] sm:$0xff]
    %v167 = vld [vmem:[#allocation2 + $0x3e0] sm:$0xff]
    %v168 = vld [vmem:[#allocation2 + $0x3e8] sm:$0xff]
    %v169 = vld [vmem:[#allocation2 + $0x3f0] sm:$0xff]
    %v170 = vld [vmem:[#allocation2 + $0x3f8] sm:$0xff]
    %171 = vmatpush.xpose.msra.mxu0 %v58
    %172 = vmatpush.xpose.msra.mxu0 %v57
    %173 = vmatpush.xpose.msra.mxu0 %v56
    %174 = vmatpush.xpose.msra.mxu0 %v55
    %175 = vmatpush.xpose.msra.mxu0 %v54
    %176 = vmatpush.xpose.msra.mxu0 %v53
    %177 = vmatpush.xpose.msra.mxu0 %v52
    %178 = vmatpush.xpose.msra.mxu0 %v51
    %179 = vmatpush.xpose.msra.mxu0 %v50
    %180 = vmatpush.xpose.msra.mxu0 %v49
    %181 = vmatpush.xpose.msra.mxu0 %v48
    %182 = vmatpush.xpose.msra.mxu0 %v47
    %183 = vmatpush.xpose.msra.mxu0 %v46
    %184 = vmatpush.xpose.msra.mxu0 %v45
    %185 = vmatpush.xpose.msra.mxu0 %v44
    %186 = vmatpush.xpose.msra.mxu0 %v43
    %187 = vmatmul.f32.gmra.mxu0 %v42
    %v188 = vpop.f32.mrf.mxu0
    %v189 = vadd.f32 0.0, %v188
    %190 = vdwg.mxu0
    %191 = vmatpush.xpose.msra.mxu0 %v74
    %192 = vmatpush.xpose.msra.mxu0 %v73
    %193 = vmatpush.xpose.msra.mxu0 %v72
    %194 = vmatpush.xpose.msra.mxu0 %v71
    %195 = vmatpush.xpose.msra.mxu0 %v70
    %196 = vmatpush.xpose.msra.mxu0 %v69
    %197 = vmatpush.xpose.msra.mxu0 %v68
    %198 = vmatpush.xpose.msra.mxu0 %v67
    %199 = vmatpush.xpose.msra.mxu0 %v66
    %200 = vmatpush.xpose.msra.mxu0 %v65
    %201 = vmatpush.xpose.msra.mxu0 %v64
    %202 = vmatpush.xpose.msra.mxu0 %v63
    %203 = vmatpush.xpose.msra.mxu0 %v62
    %204 = vmatpush.xpose.msra.mxu0 %v61
    %205 = vmatpush.xpose.msra.mxu0 %v60
    %206 = vmatpush.xpose.msra.mxu0 %v59
    %207 = vmatmul.f32.gmra.mxu0 %v42
    %v208 = vpop.f32.mrf.mxu0
    %v209 = vadd.f32 0.0, %v208
    %210 = vdwg.mxu0
    %211 = vmatpush.xpose.msra.mxu0 %v90
    %212 = vmatpush.xpose.msra.mxu0 %v89
    %213 = vmatpush.xpose.msra.mxu0 %v88
    %214 = vmatpush.xpose.msra.mxu0 %v87
    %215 = vmatpush.xpose.msra.mxu0 %v86
    %216 = vmatpush.xpose.msra.mxu0 %v85
    %217 = vmatpush.xpose.msra.mxu0 %v84
    %218 = vmatpush.xpose.msra.mxu0 %v83
    %219 = vmatpush.xpose.msra.mxu0 %v82
    %220 = vmatpush.xpose.msra.mxu0 %v81
    %221 = vmatpush.xpose.msra.mxu0 %v80
    %222 = vmatpush.xpose.msra.mxu0 %v79
    %223 = vmatpush.xpose.msra.mxu0 %v78
    %224 = vmatpush.xpose.msra.mxu0 %v77
    %225 = vmatpush.xpose.msra.mxu0 %v76
    %226 = vmatpush.xpose.msra.mxu0 %v75
    %227 = vmatmul.f32.gmra.mxu0 %v42
    %v228 = vpop.f32.mrf.mxu0
    %v229 = vadd.f32 0.0, %v228
    %230 = vdwg.mxu0
    %231 = vmatpush.xpose.msra.mxu0 %v106
    %232 = vmatpush.xpose.msra.mxu0 %v105
    %233 = vmatpush.xpose.msra.mxu0 %v104
    %234 = vmatpush.xpose.msra.mxu0 %v103
    %235 = vmatpush.xpose.msra.mxu0 %v102
    %236 = vmatpush.xpose.msra.mxu0 %v101
    %237 = vmatpush.xpose.msra.mxu0 %v100
    %238 = vmatpush.xpose.msra.mxu0 %v99
    %239 = vmatpush.xpose.msra.mxu0 %v98
    %240 = vmatpush.xpose.msra.mxu0 %v97
    %241 = vmatpush.xpose.msra.mxu0 %v96
    %242 = vmatpush.xpose.msra.mxu0 %v95
    %243 = vmatpush.xpose.msra.mxu0 %v94
    %244 = vmatpush.xpose.msra.mxu0 %v93
    %245 = vmatpush.xpose.msra.mxu0 %v92
    %246 = vmatpush.xpose.msra.mxu0 %v91
    %247 = vmatmul.f32.gmra.mxu0 %v42
    %v248 = vpop.f32.mrf.mxu0
    %v249 = vadd.f32 0.0, %v248
    %250 = vdwg.mxu0
    %251 = vmatpush.xpose.msra.mxu0 %v122
    %252 = vmatpush.xpose.msra.mxu0 %v121
    %253 = vmatpush.xpose.msra.mxu0 %v120
    %254 = vmatpush.xpose.msra.mxu0 %v119
    %255 = vmatpush.xpose.msra.mxu0 %v118
    %256 = vmatpush.xpose.msra.mxu0 %v117
    %257 = vmatpush.xpose.msra.mxu0 %v116
    %258 = vmatpush.xpose.msra.mxu0 %v115
    %259 = vmatpush.xpose.msra.mxu0 %v114
    %260 = vmatpush.xpose.msra.mxu0 %v113
    %261 = vmatpush.xpose.msra.mxu0 %v112
    %262 = vmatpush.xpose.msra.mxu0 %v111
    %263 = vmatpush.xpose.msra.mxu0 %v110
    %264 = vmatpush.xpose.msra.mxu0 %v109
    %265 = vmatpush.xpose.msra.mxu0 %v108
    %266 = vmatpush.xpose.msra.mxu0 %v107
    %267 = vmatmul.f32.gmra.mxu0 %v42
    %v268 = vpop.f32.mrf.mxu0
    %v269 = vadd.f32 0.0, %v268
    %270 = vdwg.mxu0
    %271 = vmatpush.xpose.msra.mxu0 %v138
    %272 = vmatpush.xpose.msra.mxu0 %v137
    %273 = vmatpush.xpose.msra.mxu0 %v136
    %274 = vmatpush.xpose.msra.mxu0 %v135
    %275 = vmatpush.xpose.msra.mxu0 %v134
    %276 = vmatpush.xpose.msra.mxu0 %v133
    %277 = vmatpush.xpose.msra.mxu0 %v132
    %278 = vmatpush.xpose.msra.mxu0 %v131
    %279 = vmatpush.xpose.msra.mxu0 %v130
    %280 = vmatpush.xpose.msra.mxu0 %v129
    %281 = vmatpush.xpose.msra.mxu0 %v128
    %282 = vmatpush.xpose.msra.mxu0 %v127
    %283 = vmatpush.xpose.msra.mxu0 %v126
    %284 = vmatpush.xpose.msra.mxu0 %v125
    %285 = vmatpush.xpose.msra.mxu0 %v124
    %286 = vmatpush.xpose.msra.mxu0 %v123
    %287 = vmatmul.f32.gmra.mxu0 %v42
    %v288 = vpop.f32.mrf.mxu0
    %v289 = vadd.f32 0.0, %v288
    %290 = vdwg.mxu0
    %291 = vmatpush.xpose.msra.mxu0 %v154
    %292 = vmatpush.xpose.msra.mxu0 %v153
    %293 = vmatpush.xpose.msra.mxu0 %v152
    %294 = vmatpush.xpose.msra.mxu0 %v151
    %295 = vmatpush.xpose.msra.mxu0 %v150
    %296 = vmatpush.xpose.msra.mxu0 %v149
    %297 = vmatpush.xpose.msra.mxu0 %v148
    %298 = vmatpush.xpose.msra.mxu0 %v147
    %299 = vmatpush.xpose.msra.mxu0 %v146
    %300 = vmatpush.xpose.msra.mxu0 %v145
    %301 = vmatpush.xpose.msra.mxu0 %v144
    %302 = vmatpush.xpose.msra.mxu0 %v143
    %303 = vmatpush.xpose.msra.mxu0 %v142
    %304 = vmatpush.xpose.msra.mxu0 %v141
    %305 = vmatpush.xpose.msra.mxu0 %v140
    %306 = vmatpush.xpose.msra.mxu0 %v139
    %307 = vmatmul.f32.gmra.mxu0 %v42
    %v308 = vpop.f32.mrf.mxu0
    %v309 = vadd.f32 0.0, %v308
    %310 = vdwg.mxu0
    %311 = vmatpush.xpose.msra.mxu0 %v170
    %312 = vmatpush.xpose.msra.mxu0 %v169
    %313 = vmatpush.xpose.msra.mxu0 %v168
    %314 = vmatpush.xpose.msra.mxu0 %v167
    %315 = vmatpush.xpose.msra.mxu0 %v166
    %316 = vmatpush.xpose.msra.mxu0 %v165
    %317 = vmatpush.xpose.msra.mxu0 %v164
    %318 = vmatpush.xpose.msra.mxu0 %v163
    %319 = vmatpush.xpose.msra.mxu0 %v162
    %320 = vmatpush.xpose.msra.mxu0 %v161
    %321 = vmatpush.xpose.msra.mxu0 %v160
    %322 = vmatpush.xpose.msra.mxu0 %v159
    %323 = vmatpush.xpose.msra.mxu0 %v158
    %324 = vmatpush.xpose.msra.mxu0 %v157
    %325 = vmatpush.xpose.msra.mxu0 %v156
    %326 = vmatpush.xpose.msra.mxu0 %v155
    %327 = vmatmul.f32.gmra.mxu0 %v42
    %v328 = vpop.f32.mrf.mxu0
    %v329 = vadd.f32 0.0, %v328
    %330 = vdwg.mxu0
    %v339 = vrot.slane %v209, 7
    %v340 = vrot.slane %v229, 6
    %v341 = vrot.slane %v249, 5
    %v342 = vrot.slane %v269, 4
    %v343 = vrot.slane %v289, 3
    %v344 = vrot.slane %v309, 2
    %v345 = vrot.slane %v329, 1
    %vm346 = vcmask 1040384
    %v347 = vsel %vm346, %v189, %v339
    %vm348 = vcmask 1042434
    %v349 = vsel %vm348, %v340, %v341
    %vm350 = vcmask 1041408
    %v351 = vsel %vm350, %v347, %v349
    %vm352 = vcmask 1044484
    %v353 = vsel %vm352, %v342, %v343
    %vm354 = vcmask 1046534
    %v355 = vsel %vm354, %v344, %v345
    %vm356 = vcmask 1045508
    %v357 = vsel %vm356, %v353, %v355
    %vm358 = vcmask 1043456
    %v359 = vsel %vm358, %v351, %v357
    %361 = vst [vmem:[#allocation7] sm:$0xff] %v359
    // Predicated region
    $region18: #{tpu_custom_call.1} parent=1 // pred_check
      _
    $region19: #{tpu_custom_call.1} parent=1 // pred_check_branch
      %363 = sbr.rel (0) target = $region21
    $region20: #{tpu_custom_call.1} parent=1 // pred_region
      %365 = vsyncadd [#allocation4], 0
      %s367 = sshll.u32 [#allocation7], 4
      %s368 = int_to_ptr.vmem [resolvable:$true] %s367
      %s369 = sshll.u32 %s2, 4
      %s370 = int_to_ptr.hbm [resolvable:$true] %s369
      %372 = dma.vmem_to_hbm [thread:$0]  %s368, 128, %s370, [#allocation4]
    $region21: #{tpu_custom_call.1} parent=1 // pred_fallthru
      _
    // Predicated region
    $region22: #{tpu_custom_call.1} parent=1 // pred_check
      _
    $region23: #{tpu_custom_call.1} parent=1 // pred_check_branch
      %374 = sbr.rel (0) target = $region25
    $region24: #{tpu_custom_call.1} parent=1 // pred_region
      %376 = dma.done [#allocation4], 128
    $region25: #{tpu_custom_call.1} parent=1 // pred_fallthru
      _
    %377 = vsyncpa [#allocation3], 1
    %378 = vsyncpa [#allocation6], 1
    %379 = vsyncpa [#allocation4], 1

</llo_original>
